<compile_context>
chip_gen: v6e
topology: v6e:2x2x1
jax: 0.10.0
libtpu: 0.0.40
codegen_flags: <defaults>
</compile_context>

<pallas_src>
import jax
import jax.numpy as jnp
from jax.experimental import pallas as pl
from jax.experimental.pallas import tpu as pltpu


def _fused_conv_bn_relu_kernel(w_ref, b_ref, p_ref, o_ref):
    # w_ref : (Ctot, CK)  folded conv+BN weights (bf16), all scales, centered
    # b_ref : (Ctot, 1)   folded bias (f32)
    # p_ref : (CK, TM)    shared im2col patches for this M tile (bf16)
    # o_ref : (Ctot, TM)  output tile; M on the lane axis (lane-dense stores)
    acc = jnp.dot(w_ref[...], p_ref[...], preferred_element_type=jnp.float32)
    o_ref[...] = jnp.maximum(acc + b_ref[...], 0.0).astype(o_ref.dtype)


def init_params(key, in_channels, h=4, K=6, C=16):
    cout = C // h
    kernel_sizes = [2 ** i * K for i in range(h)]
    params = {"w": [], "b": [], "gamma": [], "beta": [], "mean": [], "var": []}
    keys = jax.random.split(key, h)
    for i, k in enumerate(kernel_sizes):
        kw, kb, kg, kbe, km, kv = jax.random.split(keys[i], 6)
        fan_in = in_channels * k
        params["w"].append(
            jax.random.normal(kw, (cout, in_channels, k), jnp.float32) / jnp.sqrt(fan_in)
        )
        params["b"].append(0.1 * jax.random.normal(kb, (cout,), jnp.float32))
        params["gamma"].append(1.0 + 0.1 * jax.random.normal(kg, (cout,), jnp.float32))
        params["beta"].append(0.1 * jax.random.normal(kbe, (cout,), jnp.float32))
        params["mean"].append(0.1 * jax.random.normal(km, (cout,), jnp.float32))
        params["var"].append(0.5 + jnp.abs(jax.random.normal(kv, (cout,), jnp.float32)))
    return params


def multiscale_forward(x, params, *, h=4, K=6, S=2, tile_m=512,
                       operand_dtype=jnp.bfloat16):
    N, Cin, L = x.shape
    kernel_sizes = [2 ** i * K for i in range(h)]
    Cout = params["w"][0].shape[0]
    Ctot = h * Cout
    Kmax = kernel_sizes[-1]
    CK = Cin * Kmax
    eps = 1e-5

    # All kernel sizes are even and padding = k//2, so every scale shares L_out
    # and every scale's window is centered at t*S inside the Kmax window.
    louts = [(L + 2 * (k // 2) - k) // S + 1 for k in kernel_sizes]
    assert all(lo == louts[0] for lo in louts)
    L_out = louts[0]
    M = N * L_out
    M_pad = pl.cdiv(M, tile_m) * tile_m

    # ---- shared im2col at Kmax, laid out (Cin*Kmax, M): M on the lane axis.
    pmax = Kmax // 2
    xp = jnp.pad(x, ((0, 0), (0, 0), (pmax, pmax)))
    idx = jnp.arange(Kmax)[:, None] + jnp.arange(L_out)[None, :] * S  # (Kmax, L_out)
    patches = xp[:, :, idx]                                           # (N, Cin, Kmax, L_out)
    patches = patches.transpose(1, 2, 0, 3).reshape(CK, M)            # (CK, N*L_out)
    patches = jnp.pad(patches, ((0, 0), (0, M_pad - M))).astype(operand_dtype)

    # ---- fold BN (eval) + conv bias into the weights; embed every scale
    #      CENTERED in the Kmax tap window, all scales into one (Ctot, CK).
    w_comb = jnp.zeros((Ctot, Cin, Kmax), jnp.float32)
    b_comb = jnp.zeros((Ctot,), jnp.float32)
    for i, k in enumerate(kernel_sizes):
        scale = params["gamma"][i] * jax.lax.rsqrt(params["var"][i] + eps)  # (Cout,)
        w_fold = params["w"][i] * scale[:, None, None]                      # (Cout, Cin, k)
        b_fold = (params["b"][i] - params["mean"][i]) * scale + params["beta"][i]
        off = (Kmax - k) // 2
        w_comb = w_comb.at[i * Cout:(i + 1) * Cout, :, off:off + k].set(w_fold)
        b_comb = b_comb.at[i * Cout:(i + 1) * Cout].set(b_fold)
    w_comb = w_comb.reshape(Ctot, CK).astype(operand_dtype)
    b_comb = b_comb.reshape(Ctot, 1)

    grid_m = M_pad // tile_m
    out = pl.pallas_call(
        _fused_conv_bn_relu_kernel,
        out_shape=jax.ShapeDtypeStruct((Ctot, M_pad), jnp.float32),
        grid=(grid_m,),
        in_specs=[
            pl.BlockSpec((Ctot, CK), lambda m: (0, 0)),       # weights (resident)
            pl.BlockSpec((Ctot, 1), lambda m: (0, 0)),        # folded bias
            pl.BlockSpec((CK, tile_m), lambda m: (0, m)),     # patch tile
        ],
        out_specs=pl.BlockSpec((Ctot, tile_m), lambda m: (0, m)),
        compiler_params=pltpu.CompilerParams(
            dimension_semantics=("parallel",)),
    )(w_comb, b_comb, patches)

    # (Ctot, M) -> (N, h*Cout, L_out), matching torch.cat(all_scales, dim=1).
    y = out[:, :M].reshape(Ctot, N, L_out).transpose(1, 0, 2)
    return y


def reference_forward(x, params, *, h=4, K=6, S=2, operand_dtype=None):
    # Pure-JAX reference (eval-mode Conv1d + BN + ReLU).  When operand_dtype is
    # set, conv operands are rounded to that dtype (mirrors the kernel's bf16
    # MXU operands) while accumulation/epilogue stay f32.
    eps = 1e-5
    outs = []
    for i in range(h):
        k = 2 ** i * K
        p = k // 2
        scale = params["gamma"][i] * jax.lax.rsqrt(params["var"][i] + eps)
        w = params["w"][i] * scale[:, None, None]
        b = (params["b"][i] - params["mean"][i]) * scale + params["beta"][i]
        xi = x
        if operand_dtype is not None:
            xi = x.astype(operand_dtype).astype(jnp.float32)
            w = w.astype(operand_dtype).astype(jnp.float32)
        conv = jax.lax.conv_general_dilated(
            xi, w, window_strides=(S,), padding=[(p, p)],
            dimension_numbers=("NCH", "OIH", "NCH"),
        )
        outs.append(jnp.maximum(conv + b[None, :, None], 0.0))
    return jnp.concatenate(outs, axis=1)


if __name__ == "__main__":
    key = jax.random.PRNGKey(0)
    kx, kp = jax.random.split(key)

    N, Cin, L = 2, 4, 16
    h, K, C, S = 4, 6, 16, 2

    x = jax.random.normal(kx, (N, Cin, L), jnp.float32)
    params = init_params(kp, Cin, h=h, K=K, C=C)

    y = multiscale_forward(x, params, h=h, K=K, S=S)
    y = jax.block_until_ready(y)

    assert y.shape == (N, C, L // S + 1), y.shape

    # Tight check against a reference using the same bf16-rounded operands.
    y_ref_q = reference_forward(x, params, h=h, K=K, S=S, operand_dtype=jnp.bfloat16)
    err_q = float(jnp.max(jnp.abs(y - y_ref_q)))
    assert jnp.allclose(y, y_ref_q, atol=2e-3, rtol=2e-3), err_q

    # Loose sanity check against the full-precision reference.
    y_ref = reference_forward(x, params, h=h, K=K, S=S)
    err = float(jnp.max(jnp.abs(y - y_ref)))
    assert jnp.allclose(y, y_ref, atol=1e-1, rtol=1e-1), err

    print("KERNEL_OK")
</pallas_src>

<mosaic_0001>
module attributes {stable_mosaic.version = 11 : i64} {
  func.func @_fused_conv_bn_relu_kernel(%arg0: i32, %arg1: memref<16x192xbf16, #tpu.memory_space<vmem>>, %arg2: memref<16x1xf32, #tpu.memory_space<vmem>>, %arg3: memref<192x512xbf16, #tpu.memory_space<vmem>>, %arg4: memref<16x512xf32, #tpu.memory_space<vmem>>) attributes {dimension_semantics = [#tpu.dimension_semantics<parallel>], iteration_bounds = array<i64: 1>, scalar_prefetch = 0 : i64, scratch_operands = 0 : i64, tpu.core_type = #tpu.core_type<tc>, window_params = [{pipeline_mode = #tpu.pipeline_mode<synchronous>, transform_indices = @transform_0, window_bounds = array<i64: 16, 192>}, {pipeline_mode = #tpu.pipeline_mode<synchronous>, transform_indices = @transform_1, window_bounds = array<i64: 16, 1>}, {transform_indices = @transform_2, window_bounds = array<i64: 192, 512>}, {transform_indices = @transform_3, window_bounds = array<i64: 16, 512>}]} {
    %c0 = arith.constant 0 : index
    %c0_0 = arith.constant 0 : index
    %0 = vector.load %arg1[%c0, %c0_0] : memref<16x192xbf16, #tpu.memory_space<vmem>>, vector<16x192xbf16>
    %c0_1 = arith.constant 0 : index
    %c0_2 = arith.constant 0 : index
    %1 = vector.load %arg3[%c0_1, %c0_2] : memref<192x512xbf16, #tpu.memory_space<vmem>>, vector<192x512xbf16>
    %cst = arith.constant dense<0.000000e+00> : vector<16x512xf32>
    %2 = tpu.matmul %0, %1, %cst {dimension_numbers = #tpu.dot_dimension_numbers<[1], [0], [0], [1], [0, 0, 1, 1], [], []>} : vector<16x192xbf16>, vector<192x512xbf16>, vector<16x512xf32> -> vector<16x512xf32>
    %c0_3 = arith.constant 0 : index
    %c0_4 = arith.constant 0 : index
    %3 = vector.load %arg2[%c0_3, %c0_4] : memref<16x1xf32, #tpu.memory_space<vmem>>, vector<16x1xf32>
    %4 = vector.broadcast %3 : vector<16x1xf32> to vector<16x512xf32>
    %5 = arith.addf %2, %4 : vector<16x512xf32>
    %cst_5 = arith.constant 0.000000e+00 : f32
    %6 = vector.broadcast %cst_5 : f32 to vector<16x512xf32>
    %7 = arith.maximumf %5, %6 : vector<16x512xf32>
    %c0_6 = arith.constant 0 : index
    %c0_7 = arith.constant 0 : index
    %8 = vector.load %arg4[%c0_6, %c0_7] : memref<16x512xf32, #tpu.memory_space<vmem>>, vector<16x512xf32>
    tpu.vector_store %arg4[%c0_6, %c0_7], %7 {strides = array<i32>} : memref<16x512xf32, #tpu.memory_space<vmem>>, vector<16x512xf32>,
    return
  }
  func.func @transform_0(%arg0: i32) -> (i32, i32) {
    %c0_i32 = arith.constant 0 : i32
    %c0_i32_0 = arith.constant 0 : i32
    %c0_i32_1 = arith.constant 0 : i32
    return %c0_i32, %c0_i32_0 : i32, i32
  }
  func.func @transform_1(%arg0: i32) -> (i32, i32) {
    %c0_i32 = arith.constant 0 : i32
    %c0_i32_0 = arith.constant 0 : i32
    %c0_i32_1 = arith.constant 0 : i32
    return %c0_i32, %c0_i32_0 : i32, i32
  }
  func.func @transform_2(%arg0: i32) -> (i32, i32) {
    %c0_i32 = arith.constant 0 : i32
    %c0_i32_0 = arith.constant 0 : i32
    return %c0_i32, %arg0 : i32, i32
  }
  func.func @transform_3(%arg0: i32) -> (i32, i32) {
    %c0_i32 = arith.constant 0 : i32
    %c0_i32_0 = arith.constant 0 : i32
    return %c0_i32, %arg0 : i32, i32
  }
}

</mosaic_0001>

<llo_original>
// kernel: tpu_custom_call.1
$region0: #{tpu_custom_call.1}
  #allocation0 [shape = 'u32[]', space=smem, size = 0x4, offset = 0x4, fixed_abs, tag = 'smem constant byte address 0x4 - core index']
  #allocation1 [shape = 'u32[144,128]{1,0:T(1,128)}', space=vmem, size = 0x12000, scoped, tag = 'internal scratch']
  %s0 = inlined_call_operand.vmem [shape: bf16[16,192], index: 0, kind: input, shape index: {}]
  %s1 = inlined_call_operand.vmem [shape: f32[16,1], index: 1, kind: input, shape index: {}]
  %s2 = inlined_call_operand.hbm [shape: bf16[192,512], index: 2, kind: input, shape index: {}]
  %s3 = inlined_call_operand.hbm [shape: f32[16,512], index: 3, kind: output, shape index: {}]
  %s4 = sld [smem:[#allocation0]]
  $region26: #{tpu_custom_call.1} parent=0
    _
  %s6 = ssub.s32 1, %s4
  %s7 = scalar_select 0, %s6, %s4
  $region1: #{tpu_custom_call.1} parent=0
    #allocation2 [shape = 'u8[196608]{0}', space=vmem, size = 0x30000, scoped, tag = 'input window, operand 2, single buffered']
    #allocation3 [shape = 's32[1]{0}', space=sflag, size = 0x4, scoped, tag = 'scoped memory for tpu_custom_call.1']
    #allocation4 [shape = 's32[1]{0}', space=sflag, size = 0x4, scoped, tag = 'scoped memory for tpu_custom_call.1']
    #allocation5 [shape = 'u8[32768]{0}', space=vmem, size = 0x8000, scoped, tag = 'output window, operand 0, single buffered']
    %8 = vsyncpa [#allocation3], 0
    %9 = vsyncpa [#allocation4], 0
    // Predicated region
    $region2: #{tpu_custom_call.1} parent=1 // pred_check
      _
    $region3: #{tpu_custom_call.1} parent=1 // pred_check_branch
      %11 = sbr.rel (0) target = $region5
    $region4: #{tpu_custom_call.1} parent=1 // pred_region
      _
    $region5: #{tpu_custom_call.1} parent=1 // pred_fallthru
      _
    // Predicated region
    $region6: #{tpu_custom_call.1} parent=1 // pred_check
      _
    $region7: #{tpu_custom_call.1} parent=1 // pred_check_branch
      %13 = sbr.rel (0) target = $region9
    $region8: #{tpu_custom_call.1} parent=1 // pred_region
      _
    $region9: #{tpu_custom_call.1} parent=1 // pred_fallthru
      _
    // Predicated region
    $region10: #{tpu_custom_call.1} parent=1 // pred_check
      _
    $region11: #{tpu_custom_call.1} parent=1 // pred_check_branch
      %15 = sbr.rel (0) target = $region13
    $region12: #{tpu_custom_call.1} parent=1 // pred_region
      %s17 = ssub.s32 6144, 6144
      %18 = vsyncadd [#allocation3], %s17
      %s19 = sshll.u32 [#allocation2], 4
      %s20 = int_to_ptr.vmem [resolvable:$true] %s19
      %25 = dma.hbm_to_vmem [thread:$0]  %s2, 6144, %s20, [#allocation3], 256, 256, 16
    $region13: #{tpu_custom_call.1} parent=1 // pred_fallthru
      _
    // Predicated region
    $region14: #{tpu_custom_call.1} parent=1 // pred_check
      _
    $region15: #{tpu_custom_call.1} parent=1 // pred_check_branch
      %27 = sbr.rel (0) target = $region17
    $region16: #{tpu_custom_call.1} parent=1 // pred_region
      %28 = dma.done [#allocation3], 6144
    $region17: #{tpu_custom_call.1} parent=1 // pred_fallthru
      _
    %v30 = vld [vmem:[%s0] sm:$0xff]
    %v31 = vld [vmem:[%s0 + $0x8] sm:$0xff]
    %v32 = vld [vmem:[#allocation2] sm:$0xff]
    %v33 = vld [vmem:[#allocation2 + $0x8] sm:$0xff]
    %v34 = vld [vmem:[#allocation2 + $0x10] sm:$0xff]
    %v35 = vld [vmem:[#allocation2 + $0x18] sm:$0xff]
    %v36 = vld [vmem:[#allocation2 + $0x20] sm:$0xff]
    %v37 = vld [vmem:[#allocation2 + $0x28] sm:$0xff]
    %v38 = vld [vmem:[#allocation2 + $0x30] sm:$0xff]
    %v39 = vld [vmem:[#allocation2 + $0x38] sm:$0xff]
    %v40 = vld [vmem:[#allocation2 + $0x40] sm:$0xff]
    %v41 = vld [vmem:[#allocation2 + $0x48] sm:$0xff]
    %v42 = vld [vmem:[#allocation2 + $0x50] sm:$0xff]
    %v43 = vld [vmem:[#allocation2 + $0x58] sm:$0xff]
    %v44 = vld [vmem:[#allocation2 + $0x60] sm:$0xff]
    %v45 = vld [vmem:[#allocation2 + $0x68] sm:$0xff]
    %v46 = vld [vmem:[#allocation2 + $0x70] sm:$0xff]
    %v47 = vld [vmem:[#allocation2 + $0x78] sm:$0xff]
    %v48 = vld [vmem:[#allocation2 + $0x80] sm:$0xff]
    %v49 = vld [vmem:[#allocation2 + $0x88] sm:$0xff]
    %v50 = vld [vmem:[#allocation2 + $0x90] sm:$0xff]
    %v51 = vld [vmem:[#allocation2 + $0x98] sm:$0xff]
    %v52 = vld [vmem:[#allocation2 + $0xa0] sm:$0xff]
    %v53 = vld [vmem:[#allocation2 + $0xa8] sm:$0xff]
    %v54 = vld [vmem:[#allocation2 + $0xb0] sm:$0xff]
    %v55 = vld [vmem:[#allocation2 + $0xb8] sm:$0xff]
    %v56 = vld [vmem:[#allocation2 + $0xc0] sm:$0xff]
    %v57 = vld [vmem:[#allocation2 + $0xc8] sm:$0xff]
    %v58 = vld [vmem:[#allocation2 + $0xd0] sm:$0xff]
    %v59 = vld [vmem:[#allocation2 + $0xd8] sm:$0xff]
    %v60 = vld [vmem:[#allocation2 + $0xe0] sm:$0xff]
    %v61 = vld [vmem:[#allocation2 + $0xe8] sm:$0xff]
    %v62 = vld [vmem:[#allocation2 + $0xf0] sm:$0xff]
    %v63 = vld [vmem:[#allocation2 + $0xf8] sm:$0xff]
    %v64 = vld [vmem:[#allocation2 + $0x100] sm:$0xff]
    %v65 = vld [vmem:[#allocation2 + $0x108] sm:$0xff]
    %v66 = vld [vmem:[#allocation2 + $0x110] sm:$0xff]
    %v67 = vld [vmem:[#allocation2 + $0x118] sm:$0xff]
    %v68 = vld [vmem:[#allocation2 + $0x120] sm:$0xff]
    %v69 = vld [vmem:[#allocation2 + $0x128] sm:$0xff]
    %v70 = vld [vmem:[#allocation2 + $0x130] sm:$0xff]
    %v71 = vld [vmem:[#allocation2 + $0x138] sm:$0xff]
    %v72 = vld [vmem:[#allocation2 + $0x140] sm:$0xff]
    %v73 = vld [vmem:[#allocation2 + $0x148] sm:$0xff]
    %v74 = vld [vmem:[#allocation2 + $0x150] sm:$0xff]
    %v75 = vld [vmem:[#allocation2 + $0x158] sm:$0xff]
    %v76 = vld [vmem:[#allocation2 + $0x160] sm:$0xff]
    %v77 = vld [vmem:[#allocation2 + $0x168] sm:$0xff]
    %v78 = vld [vmem:[#allocation2 + $0x170] sm:$0xff]
    %v79 = vld [vmem:[#allocation2 + $0x178] sm:$0xff]
    %v80 = vld [vmem:[%s1] sm:$0xff]
    %v81 = vld [vmem:[%s1 + $0x8] sm:$0xff]
    %83 = vset.pattern.permute.xlu0 0
    %84 = vperm.xlu0 %83, %v80
    %v85 = vpop.permute.xlu0 %84
    %88 = vset.pattern.permute.xlu0 0
    %89 = vperm.xlu0 %88, %v81
    %v90 = vpop.permute.xlu0 %89
    %v94 = vunpack.c.l.b16 %v30
    %v95 = vunpack.c.h.b16 %v30
    %v96 = vunpack.c.l.b16 %v31
    %v97 = vunpack.c.h.b16 %v31
    %v98 = vpack.c.b16 %v96, %v94
    %v99 = vpack.c.b16 %v97, %v95
    %v149 = vunpack.c.l.b16 %v32
    %v150 = vunpack.c.h.b16 %v32
    %v151 = vunpack.c.l.b16 %v33
    %v152 = vunpack.c.h.b16 %v33
    %v153 = vunpack.c.l.b16 %v34
    %v154 = vunpack.c.h.b16 %v34
    %v155 = vunpack.c.l.b16 %v35
    %v156 = vunpack.c.h.b16 %v35
    %v157 = vunpack.c.l.b16 %v36
    %v158 = vunpack.c.h.b16 %v36
    %v159 = vunpack.c.l.b16 %v37
    %v160 = vunpack.c.h.b16 %v37
    %v161 = vunpack.c.l.b16 %v38
    %v162 = vunpack.c.h.b16 %v38
    %v163 = vunpack.c.l.b16 %v39
    %v164 = vunpack.c.h.b16 %v39
    %v165 = vunpack.c.l.b16 %v40
    %v166 = vunpack.c.h.b16 %v40
    %v167 = vunpack.c.l.b16 %v41
    %v168 = vunpack.c.h.b16 %v41
    %v169 = vunpack.c.l.b16 %v42
    %v170 = vunpack.c.h.b16 %v42
    %v171 = vunpack.c.l.b16 %v43
    %v172 = vunpack.c.h.b16 %v43
    %v173 = vunpack.c.l.b16 %v44
    %v174 = vunpack.c.h.b16 %v44
    %v175 = vunpack.c.l.b16 %v45
    %v176 = vunpack.c.h.b16 %v45
    %v177 = vunpack.c.l.b16 %v46
    %v178 = vunpack.c.h.b16 %v46
    %v179 = vunpack.c.l.b16 %v47
    %v180 = vunpack.c.h.b16 %v47
    %v181 = vunpack.c.l.b16 %v48
    %v182 = vunpack.c.h.b16 %v48
    %v183 = vunpack.c.l.b16 %v49
    %v184 = vunpack.c.h.b16 %v49
    %v185 = vunpack.c.l.b16 %v50
    %v186 = vunpack.c.h.b16 %v50
    %v187 = vunpack.c.l.b16 %v51
    %v188 = vunpack.c.h.b16 %v51
    %v189 = vunpack.c.l.b16 %v52
    %v190 = vunpack.c.h.b16 %v52
    %v191 = vunpack.c.l.b16 %v53
    %v192 = vunpack.c.h.b16 %v53
    %v193 = vunpack.c.l.b16 %v54
    %v194 = vunpack.c.h.b16 %v54
    %v195 = vunpack.c.l.b16 %v55
    %v196 = vunpack.c.h.b16 %v55
    %v197 = vunpack.c.l.b16 %v56
    %v198 = vunpack.c.h.b16 %v56
    %v199 = vunpack.c.l.b16 %v57
    %v200 = vunpack.c.h.b16 %v57
    %v201 = vunpack.c.l.b16 %v58
    %v202 = vunpack.c.h.b16 %v58
    %v203 = vunpack.c.l.b16 %v59
    %v204 = vunpack.c.h.b16 %v59
    %v205 = vunpack.c.l.b16 %v60
    %v206 = vunpack.c.h.b16 %v60
    %v207 = vunpack.c.l.b16 %v61
    %v208 = vunpack.c.h.b16 %v61
    %v209 = vunpack.c.l.b16 %v62
    %v210 = vunpack.c.h.b16 %v62
    %v211 = vunpack.c.l.b16 %v63
    %v212 = vunpack.c.h.b16 %v63
    %v213 = vunpack.c.l.b16 %v64
    %v214 = vunpack.c.h.b16 %v64
    %v215 = vunpack.c.l.b16 %v65
    %v216 = vunpack.c.h.b16 %v65
    %v217 = vunpack.c.l.b16 %v66
    %v218 = vunpack.c.h.b16 %v66
    %v219 = vunpack.c.l.b16 %v67
    %v220 = vunpack.c.h.b16 %v67
    %v221 = vunpack.c.l.b16 %v68
    %v222 = vunpack.c.h.b16 %v68
    %v223 = vunpack.c.l.b16 %v69
    %v224 = vunpack.c.h.b16 %v69
    %v225 = vunpack.c.l.b16 %v70
    %v226 = vunpack.c.h.b16 %v70
    %v227 = vunpack.c.l.b16 %v71
    %v228 = vunpack.c.h.b16 %v71
    %v229 = vunpack.c.l.b16 %v72
    %v230 = vunpack.c.h.b16 %v72
    %v231 = vunpack.c.l.b16 %v73
    %v232 = vunpack.c.h.b16 %v73
    %v233 = vunpack.c.l.b16 %v74
    %v234 = vunpack.c.h.b16 %v74
    %v235 = vunpack.c.l.b16 %v75
    %v236 = vunpack.c.h.b16 %v75
    %v237 = vunpack.c.l.b16 %v76
    %v238 = vunpack.c.h.b16 %v76
    %v239 = vunpack.c.l.b16 %v77
    %v240 = vunpack.c.h.b16 %v77
    %v241 = vunpack.c.l.b16 %v78
    %v242 = vunpack.c.h.b16 %v78
    %v243 = vunpack.c.l.b16 %v79
    %v244 = vunpack.c.h.b16 %v79
    %v245 = vpack.c.b16 %v153, %v149
    %v246 = vpack.c.b16 %v154, %v150
    %v247 = vpack.c.b16 %v155, %v151
    %v248 = vpack.c.b16 %v156, %v152
    %v249 = vpack.c.b16 %v161, %v157
    %v250 = vpack.c.b16 %v162, %v158
    %v251 = vpack.c.b16 %v163, %v159
    %v252 = vpack.c.b16 %v164, %v160
    %v253 = vpack.c.b16 %v169, %v165
    %v254 = vpack.c.b16 %v170, %v166
    %v255 = vpack.c.b16 %v171, %v167
    %v256 = vpack.c.b16 %v172, %v168
    %v257 = vpack.c.b16 %v177, %v173
    %v258 = vpack.c.b16 %v178, %v174
    %v259 = vpack.c.b16 %v179, %v175
    %v260 = vpack.c.b16 %v180, %v176
    %v261 = vpack.c.b16 %v185, %v181
    %v262 = vpack.c.b16 %v186, %v182
    %v263 = vpack.c.b16 %v187, %v183
    %v264 = vpack.c.b16 %v188, %v184
    %v265 = vpack.c.b16 %v193, %v189
    %v266 = vpack.c.b16 %v194, %v190
    %v267 = vpack.c.b16 %v195, %v191
    %v268 = vpack.c.b16 %v196, %v192
    %v269 = vpack.c.b16 %v201, %v197
    %v270 = vpack.c.b16 %v202, %v198
    %v271 = vpack.c.b16 %v203, %v199
    %v272 = vpack.c.b16 %v204, %v200
    %v273 = vpack.c.b16 %v209, %v205
    %v274 = vpack.c.b16 %v210, %v206
    %v275 = vpack.c.b16 %v211, %v207
    %v276 = vpack.c.b16 %v212, %v208
    %v277 = vpack.c.b16 %v217, %v213
    %v278 = vpack.c.b16 %v218, %v214
    %v279 = vpack.c.b16 %v219, %v215
    %v280 = vpack.c.b16 %v220, %v216
    %v281 = vpack.c.b16 %v225, %v221
    %v282 = vpack.c.b16 %v226, %v222
    %v283 = vpack.c.b16 %v227, %v223
    %v284 = vpack.c.b16 %v228, %v224
    %v285 = vpack.c.b16 %v233, %v229
    %v286 = vpack.c.b16 %v234, %v230
    %v287 = vpack.c.b16 %v235, %v231
    %v288 = vpack.c.b16 %v236, %v232
    %v289 = vpack.c.b16 %v241, %v237
    %v290 = vpack.c.b16 %v242, %v238
    %v291 = vpack.c.b16 %v243, %v239
    %v292 = vpack.c.b16 %v244, %v240
    %vm341 = vcmask 523264
    %v343 = vsel %vm341, %v99, 0
    %345 = vmatprep.subr.bf16.mxu0 %v274
    %346 = vmatpush1.bf16.msra.mxu0 %v273
    %347 = vmatprep.subr.bf16.mxu0 %v270
    %348 = vmatpush1.bf16.msra.mxu0 %v269
    %349 = vmatprep.subr.bf16.mxu0 %v266
    %350 = vmatpush1.bf16.msra.mxu0 %v265
    %351 = vmatprep.subr.bf16.mxu0 %v262
    %352 = vmatpush1.bf16.msra.mxu0 %v261
    %353 = vmatprep.subr.bf16.mxu0 %v258
    %354 = vmatpush1.bf16.msra.mxu0 %v257
    %355 = vmatprep.subr.bf16.mxu0 %v254
    %356 = vmatpush1.bf16.msra.mxu0 %v253
    %357 = vmatprep.subr.bf16.mxu0 %v250
    %358 = vmatpush1.bf16.msra.mxu0 %v249
    %359 = vmatprep.subr.bf16.mxu0 %v246
    %360 = vmatpush1.bf16.msra.mxu0 %v245
    %361 = vmatprep.subr.bf16.mxu0 0
    %362 = vmatpush2.bf16.msra.mxu0 0
    %363 = vmatprep.subr.bf16.mxu0 0
    %364 = vmatpush2.bf16.msra.mxu0 0
    %365 = vmatprep.subr.bf16.mxu0 0
    %366 = vmatpush2.bf16.msra.mxu0 0
    %367 = vmatprep.subr.bf16.mxu0 0
    %368 = vmatpush2.bf16.msra.mxu0 0
    %369 = vmatprep.subr.bf16.mxu0 %v290
    %370 = vmatpush2.bf16.msra.mxu0 %v289
    %371 = vmatprep.subr.bf16.mxu0 %v286
    %372 = vmatpush2.bf16.msra.mxu0 %v285
    %373 = vmatprep.subr.bf16.mxu0 %v282
    %374 = vmatpush2.bf16.msra.mxu0 %v281
    %375 = vmatprep.subr.bf16.mxu0 %v278
    %376 = vmatpush2.bf16.msra.mxu0 %v277
    %377 = vmatprep.mubr.bf16.mxu0 %v343
    %378 = vmatmul.mubr.bf16.gmra.mxu0 %v98
    %v379 = vpop.f32.mrf.mxu0
    %v380 = vadd.f32 %v85, %v379
    %v381 = vpop.f32.mrf.mxu0
    %v382 = vadd.f32 %v85, %v381
    %v383 = vpop.f32.mrf.mxu0
    %v384 = vadd.f32 %v90, %v383
    %v385 = vpop.f32.mrf.mxu0
    %v386 = vadd.f32 %v90, %v385
    %387 = vdwg.mxu0
    %388 = vmatprep.subr.bf16.mxu0 %v276
    %389 = vmatpush1.bf16.msra.mxu0 %v275
    %390 = vmatprep.subr.bf16.mxu0 %v272
    %391 = vmatpush1.bf16.msra.mxu0 %v271
    %392 = vmatprep.subr.bf16.mxu0 %v268
    %393 = vmatpush1.bf16.msra.mxu0 %v267
    %394 = vmatprep.subr.bf16.mxu0 %v264
    %395 = vmatpush1.bf16.msra.mxu0 %v263
    %396 = vmatprep.subr.bf16.mxu0 %v260
    %397 = vmatpush1.bf16.msra.mxu0 %v259
    %398 = vmatprep.subr.bf16.mxu0 %v256
    %399 = vmatpush1.bf16.msra.mxu0 %v255
    %400 = vmatprep.subr.bf16.mxu0 %v252
    %401 = vmatpush1.bf16.msra.mxu0 %v251
    %402 = vmatprep.subr.bf16.mxu0 %v248
    %403 = vmatpush1.bf16.msra.mxu0 %v247
    %404 = vmatprep.subr.bf16.mxu0 0
    %405 = vmatpush2.bf16.msra.mxu0 0
    %406 = vmatprep.subr.bf16.mxu0 0
    %407 = vmatpush2.bf16.msra.mxu0 0
    %408 = vmatprep.subr.bf16.mxu0 0
    %409 = vmatpush2.bf16.msra.mxu0 0
    %410 = vmatprep.subr.bf16.mxu0 0
    %411 = vmatpush2.bf16.msra.mxu0 0
    %412 = vmatprep.subr.bf16.mxu0 %v292
    %413 = vmatpush2.bf16.msra.mxu0 %v291
    %414 = vmatprep.subr.bf16.mxu0 %v288
    %415 = vmatpush2.bf16.msra.mxu0 %v287
    %416 = vmatprep.subr.bf16.mxu0 %v284
    %417 = vmatpush2.bf16.msra.mxu0 %v283
    %418 = vmatprep.subr.bf16.mxu0 %v280
    %419 = vmatpush2.bf16.msra.mxu0 %v279
    %420 = vmatprep.mubr.bf16.mxu0 %v343
    %421 = vmatmul.mubr.bf16.gmra.mxu0 %v98
    %v422 = vpop.f32.mrf.mxu0
    %v423 = vadd.f32 %v85, %v422
    %v424 = vpop.f32.mrf.mxu0
    %v425 = vadd.f32 %v85, %v424
    %v426 = vpop.f32.mrf.mxu0
    %v427 = vadd.f32 %v90, %v426
    %v428 = vpop.f32.mrf.mxu0
    %v429 = vadd.f32 %v90, %v428
    %430 = vdwg.mxu0
    %v431 = vmax.f32 %v380, 0.0
    %v432 = vmax.f32 %v382, 0.0
    %v433 = vmax.f32 %v423, 0.0
    %v434 = vmax.f32 %v425, 0.0
    %v435 = vmax.f32 %v384, 0.0
    %v436 = vmax.f32 %v386, 0.0
    %v437 = vmax.f32 %v427, 0.0
    %v438 = vmax.f32 %v429, 0.0
    %439 = vst [vmem:[#allocation5] sm:$0xff] %v431
    %440 = vst [vmem:[#allocation5 + $0x8] sm:$0xff] %v432
    %441 = vst [vmem:[#allocation5 + $0x10] sm:$0xff] %v433
    %442 = vst [vmem:[#allocation5 + $0x18] sm:$0xff] %v434
    %443 = vst [vmem:[#allocation5 + $0x20] sm:$0xff] %v435
    %444 = vst [vmem:[#allocation5 + $0x28] sm:$0xff] %v436
    %445 = vst [vmem:[#allocation5 + $0x30] sm:$0xff] %v437
    %446 = vst [vmem:[#allocation5 + $0x38] sm:$0xff] %v438
    // Predicated region
    $region18: #{tpu_custom_call.1} parent=1 // pred_check
      _
    $region19: #{tpu_custom_call.1} parent=1 // pred_check_branch
      %448 = sbr.rel (0) target = $region21
    $region20: #{tpu_custom_call.1} parent=1 // pred_region
      %s450 = ssub.s32 1024, 1024
      %451 = vsyncadd [#allocation4], %s450
      %s452 = sshll.u32 [#allocation5], 4
      %s453 = int_to_ptr.vmem [resolvable:$true] %s452
      %458 = dma.vmem_to_hbm [thread:$0]  %s453, 1024, %s3, [#allocation4], 512, 512, 32
    $region21: #{tpu_custom_call.1} parent=1 // pred_fallthru
      _
    // Predicated region
    $region22: #{tpu_custom_call.1} parent=1 // pred_check
      _
    $region23: #{tpu_custom_call.1} parent=1 // pred_check_branch
      %460 = sbr.rel (0) target = $region25
    $region24: #{tpu_custom_call.1} parent=1 // pred_region
      %461 = dma.done [#allocation4], 1024
    $region25: #{tpu_custom_call.1} parent=1 // pred_fallthru
      _
    %462 = vsyncpa [#allocation3], 1
    %463 = vsyncpa [#allocation4], 1

</llo_original>
